<compile_context>
chip_gen: v6e
topology: v6e:2x2x1
jax: 0.10.0
libtpu: 0.0.40
codegen_flags: <defaults>
</compile_context>

<pallas_src>
import jax
import jax.numpy as jnp
from jax.experimental import pallas as pl
from jax.experimental.pallas import tpu as pltpu

EMBED_DIM = 32
_LANES = 128
_SUBLANES = 8
_MAX_TILE_FOOTPRINT_BYTES = 12 * 1024 * 1024  # double-buffered in+out budget


def _round_up(x, m):
    return ((x + m - 1) // m) * m


def _linear_kernel(y_ref, w_ref, o_ref):
    # y_ref: (tm, C) activation tile; w_ref: (C, C) resident weight (in, out).
    o_ref[...] = jnp.dot(
        y_ref[...], w_ref[...], preferred_element_type=jnp.float32
    ).astype(o_ref.dtype)


def _tiled_matmul(y2d, w_sq, block_rows):
    """Returns y2d @ w_sq with the batch (row) dim tiled on the grid."""
    R, C = y2d.shape

    if R <= _SUBLANES:
        tm = R  # full-extent block: always a legal block shape, single step
    else:
        # Multiple of 8 sublanes; at least 2 grid steps when possible (v7x
        # megacore); capped by block_rows and by the VMEM footprint budget
        # (2x double-buffered (tm, C) tiles for input and output).
        tm = min(block_rows, _round_up(pl.cdiv(R, 2), _SUBLANES))
        bytes_per_row = 4 * C * y2d.dtype.itemsize
        max_tm = max(_SUBLANES,
                     (_MAX_TILE_FOOTPRINT_BYTES // bytes_per_row)
                     // _SUBLANES * _SUBLANES)
        tm = max(_SUBLANES, min(tm, max_tm))

    grid = (pl.cdiv(R, tm),)

    return pl.pallas_call(
        _linear_kernel,
        out_shape=jax.ShapeDtypeStruct((R, C), y2d.dtype),
        grid=grid,
        in_specs=[
            # y: one (tm, C) batch tile per grid step; ragged last block is
            # masked by Pallas (no pad / slice round-trips in HBM).
            pl.BlockSpec((tm, C), lambda i: (i, 0)),
            # Weight: constant index_map -> fetched once, resident in VMEM.
            pl.BlockSpec((C, C), lambda i: (0, 0)),
        ],
        out_specs=pl.BlockSpec((tm, C), lambda i: (i, 0)),
        compiler_params=pltpu.CompilerParams(
            dimension_semantics=("parallel",),
        ),
    )(y2d, w_sq)


def odef2_forward(t, y, w, *, block_m=16384):
    """Forward pass of ODEF2: net(y) = y @ w.T.  `t` is unused.

    y: (B, D) activations, w: (D, D) PyTorch-layout weight (out, in).
    block_m: batch tile size in *original* rows.
    """
    del t  # ODEF2.forward ignores t
    B, D = y.shape
    assert w.shape == (D, D)

    # One-time transpose in the wrapper: kernel contracts on w_t's leading dim.
    w_t = jnp.transpose(w)

    fold = _LANES // D  # 4: pack 4 rows of 32 features into 128 lanes
    if fold > 1 and B % fold == 0:
        # Lane-dense path: (B, 32) -> (B/4, 128) is a free row-major reshape;
        # block-diagonal (128, 128) weight = blockdiag(w_t, w_t, w_t, w_t).
        w_big = jnp.kron(jnp.eye(fold, dtype=w_t.dtype), w_t)
        y_folded = y.reshape(B // fold, fold * D)
        out = _tiled_matmul(y_folded, w_big, max(block_m // fold, _SUBLANES))
        return out.reshape(B, D)

    # Fallback for batches not divisible by the fold factor: lane-sparse but
    # still pad/slice-free and tiled.
    return _tiled_matmul(y, w_t, block_m)


def odef2_reference(t, y, w):
    del t
    return y @ w.T


if __name__ == "__main__":
    key = jax.random.PRNGKey(0)
    k_w, k_y, k_y2, k_y3 = jax.random.split(key, 4)

    # Deterministic weight init mimicking nn.Linear's kaiming-uniform bounds:
    # U(-1/sqrt(in_features), 1/sqrt(in_features)), shape (out, in).
    bound = 1.0 / jnp.sqrt(jnp.float32(EMBED_DIM))
    w = jax.random.uniform(
        k_w, (EMBED_DIM, EMBED_DIM), dtype=jnp.float32,
        minval=-bound, maxval=bound,
    )
    t = jnp.float32(0.0)  # unused by the module, included for signature parity

    # 1) Small demo batch (folded lane-dense path, single full-extent block).
    batch = 8
    y = jax.random.normal(k_y, (batch, EMBED_DIM), dtype=jnp.float32)
    out = jax.block_until_ready(odef2_forward(t, y, w))
    ref = odef2_reference(t, y, w)
    assert out.shape == (batch, EMBED_DIM)
    assert jnp.allclose(out, ref, atol=1e-5, rtol=1e-5)

    # 2) Larger batch divisible by 4: folded path, >=2 grid steps with a
    #    ragged (masked) last block -- no pad / slice.
    batch2 = 200
    y2 = jax.random.normal(k_y2, (batch2, EMBED_DIM), dtype=jnp.float32)
    out2 = jax.block_until_ready(odef2_forward(t, y2, w))
    ref2 = odef2_reference(t, y2, w)
    assert out2.shape == (batch2, EMBED_DIM)
    assert jnp.allclose(out2, ref2, atol=1e-5, rtol=1e-5)

    # 3) Batch NOT divisible by 4: exercises the lane-sparse fallback path
    #    with a ragged last block.
    batch3 = 37
    y3 = jax.random.normal(k_y3, (batch3, EMBED_DIM), dtype=jnp.float32)
    out3 = jax.block_until_ready(odef2_forward(t, y3, w))
    ref3 = odef2_reference(t, y3, w)
    assert out3.shape == (batch3, EMBED_DIM)
    assert jnp.allclose(out3, ref3, atol=1e-5, rtol=1e-5)

    print("KERNEL_OK")
</pallas_src>

<mosaic_0001>
module attributes {stable_mosaic.version = 11 : i64} {
  func.func @_linear_kernel(%arg0: i32, %arg1: memref<2x128xf32, #tpu.memory_space<vmem>>, %arg2: memref<128x128xf32, #tpu.memory_space<vmem>>, %arg3: memref<2x128xf32, #tpu.memory_space<vmem>>) attributes {dimension_semantics = [#tpu.dimension_semantics<parallel>], iteration_bounds = array<i64: 1>, scalar_prefetch = 0 : i64, scratch_operands = 0 : i64, tpu.core_type = #tpu.core_type<tc>, window_params = [{transform_indices = @transform_0, window_bounds = array<i64: 2, 128>}, {pipeline_mode = #tpu.pipeline_mode<synchronous>, transform_indices = @transform_1, window_bounds = array<i64: 128, 128>}, {transform_indices = @transform_2, window_bounds = array<i64: 2, 128>}]} {
    %c0 = arith.constant 0 : index
    %c0_0 = arith.constant 0 : index
    %0 = vector.load %arg1[%c0, %c0_0] : memref<2x128xf32, #tpu.memory_space<vmem>>, vector<2x128xf32>
    %c0_1 = arith.constant 0 : index
    %c0_2 = arith.constant 0 : index
    %1 = vector.load %arg2[%c0_1, %c0_2] : memref<128x128xf32, #tpu.memory_space<vmem>>, vector<128x128xf32>
    %cst = arith.constant dense<0.000000e+00> : vector<2x128xf32>
    %2 = tpu.matmul %0, %1, %cst {dimension_numbers = #tpu.dot_dimension_numbers<[1], [0], [0], [1], [0, 0, 1, 1], [], []>} : vector<2x128xf32>, vector<128x128xf32>, vector<2x128xf32> -> vector<2x128xf32>
    %c0_3 = arith.constant 0 : index
    %c0_4 = arith.constant 0 : index
    %3 = vector.load %arg3[%c0_3, %c0_4] : memref<2x128xf32, #tpu.memory_space<vmem>>, vector<2x128xf32>
    tpu.vector_store %arg3[%c0_3, %c0_4], %2 {strides = array<i32>} : memref<2x128xf32, #tpu.memory_space<vmem>>, vector<2x128xf32>,
    return
  }
  func.func @transform_0(%arg0: i32) -> (i32, i32) {
    %c0_i32 = arith.constant 0 : i32
    %c0_i32_0 = arith.constant 0 : i32
    return %arg0, %c0_i32 : i32, i32
  }
  func.func @transform_1(%arg0: i32) -> (i32, i32) {
    %c0_i32 = arith.constant 0 : i32
    %c0_i32_0 = arith.constant 0 : i32
    %c0_i32_1 = arith.constant 0 : i32
    return %c0_i32, %c0_i32_0 : i32, i32
  }
  func.func @transform_2(%arg0: i32) -> (i32, i32) {
    %c0_i32 = arith.constant 0 : i32
    %c0_i32_0 = arith.constant 0 : i32
    return %arg0, %c0_i32 : i32, i32
  }
}

</mosaic_0001>

<llo_original>
// kernel: tpu_custom_call.1
$region0: #{tpu_custom_call.1}
  #allocation0 [shape = 'u32[]', space=smem, size = 0x4, offset = 0x4, fixed_abs, tag = 'smem constant byte address 0x4 - core index']
  #allocation1 [shape = 'u32[144,128]{1,0:T(1,128)}', space=vmem, size = 0x12000, scoped, tag = 'internal scratch']
  %s0 = inlined_call_operand.hbm [shape: f32[2,128], index: 0, kind: input, shape index: {}]
  %s1 = inlined_call_operand.hbm [shape: f32[128,128], index: 1, kind: input, shape index: {}]
  %s2 = inlined_call_operand.hbm [shape: f32[2,128], index: 2, kind: output, shape index: {}]
  %s3 = sld [smem:[#allocation0]]
  $region26: #{tpu_custom_call.1} parent=0
    _
  %s5 = ssub.s32 1, %s3
  %s6 = scalar_select 0, %s5, %s3
  $region1: #{tpu_custom_call.1} parent=0
    #allocation2 [shape = 'u8[1024]{0}', space=vmem, size = 0x400, scoped, tag = 'input window, operand 0, single buffered']
    #allocation3 [shape = 's32[1]{0}', space=sflag, size = 0x4, scoped, tag = 'scoped memory for tpu_custom_call.1']
    #allocation4 [shape = 's32[1]{0}', space=sflag, size = 0x4, scoped, tag = 'scoped memory for tpu_custom_call.1']
    #allocation5 [shape = 'u8[65536]{0}', space=vmem, size = 0x10000, scoped, tag = 'input window, operand 1, single buffered']
    #allocation6 [shape = 's32[1]{0}', space=sflag, size = 0x4, scoped, tag = 'scoped memory for tpu_custom_call.1']
    #allocation7 [shape = 'u8[1024]{0}', space=vmem, size = 0x400, scoped, tag = 'output window, operand 0, single buffered']
    %7 = vsyncpa [#allocation3], 0
    %8 = vsyncpa [#allocation6], 0
    %9 = vsyncpa [#allocation4], 0
    // Predicated region
    $region2: #{tpu_custom_call.1} parent=1 // pred_check
      _
    $region3: #{tpu_custom_call.1} parent=1 // pred_check_branch
      %11 = sbr.rel (0) target = $region5
    $region4: #{tpu_custom_call.1} parent=1 // pred_region
      %s13 = ssub.s32 32, 32
      %14 = vsyncadd [#allocation3], %s13
      %s16 = sshll.u32 [#allocation2], 4
      %s17 = int_to_ptr.vmem [resolvable:$true] %s16
      %19 = dma.hbm_to_vmem [thread:$0]  %s0, 32, %s17, [#allocation3]
    $region5: #{tpu_custom_call.1} parent=1 // pred_fallthru
      _
    // Predicated region
    $region6: #{tpu_custom_call.1} parent=1 // pred_check
      _
    $region7: #{tpu_custom_call.1} parent=1 // pred_check_branch
      %21 = sbr.rel (0) target = $region9
    $region8: #{tpu_custom_call.1} parent=1 // pred_region
      %s23 = ssub.s32 2048, 2048
      %24 = vsyncadd [#allocation6], %s23
      %s25 = sshll.u32 [#allocation5], 4
      %s26 = int_to_ptr.vmem [resolvable:$true] %s25
      %31 = dma.hbm_to_vmem [thread:$0]  %s1, 2048, %s26, [#allocation6], 128, 128, 8
    $region9: #{tpu_custom_call.1} parent=1 // pred_fallthru
      _
    // Predicated region
    $region10: #{tpu_custom_call.1} parent=1 // pred_check
      _
    $region11: #{tpu_custom_call.1} parent=1 // pred_check_branch
      %33 = sbr.rel (0) target = $region13
    $region12: #{tpu_custom_call.1} parent=1 // pred_region
      %34 = dma.done [#allocation3], 32
    $region13: #{tpu_custom_call.1} parent=1 // pred_fallthru
      _
    // Predicated region
    $region14: #{tpu_custom_call.1} parent=1 // pred_check
      _
    $region15: #{tpu_custom_call.1} parent=1 // pred_check_branch
      %36 = sbr.rel (0) target = $region17
    $region16: #{tpu_custom_call.1} parent=1 // pred_region
      %37 = dma.done [#allocation6], 2048
    $region17: #{tpu_custom_call.1} parent=1 // pred_fallthru
      _
    %v38 = vld [vmem:[#allocation2] sm:$0x3]
    %v39 = vld [vmem:[#allocation5] sm:$0xff]
    %v40 = vld [vmem:[#allocation5 + $0x8] sm:$0xff]
    %v41 = vld [vmem:[#allocation5 + $0x10] sm:$0xff]
    %v42 = vld [vmem:[#allocation5 + $0x18] sm:$0xff]
    %v43 = vld [vmem:[#allocation5 + $0x20] sm:$0xff]
    %v44 = vld [vmem:[#allocation5 + $0x28] sm:$0xff]
    %v45 = vld [vmem:[#allocation5 + $0x30] sm:$0xff]
    %v46 = vld [vmem:[#allocation5 + $0x38] sm:$0xff]
    %v47 = vld [vmem:[#allocation5 + $0x40] sm:$0xff]
    %v48 = vld [vmem:[#allocation5 + $0x48] sm:$0xff]
    %v49 = vld [vmem:[#allocation5 + $0x50] sm:$0xff]
    %v50 = vld [vmem:[#allocation5 + $0x58] sm:$0xff]
    %v51 = vld [vmem:[#allocation5 + $0x60] sm:$0xff]
    %v52 = vld [vmem:[#allocation5 + $0x68] sm:$0xff]
    %v53 = vld [vmem:[#allocation5 + $0x70] sm:$0xff]
    %v54 = vld [vmem:[#allocation5 + $0x78] sm:$0xff]
    %55 = vmatprep.subr.mxu0 0.0
    %56 = vmatpush1.msra.mxu0 %v54
    %57 = vmatprep.subr.mxu0 0.0
    %58 = vmatpush1.msra.mxu0 %v53
    %59 = vmatprep.subr.mxu0 0.0
    %60 = vmatpush1.msra.mxu0 %v52
    %61 = vmatprep.subr.mxu0 0.0
    %62 = vmatpush1.msra.mxu0 %v51
    %63 = vmatprep.subr.mxu0 0.0
    %64 = vmatpush1.msra.mxu0 %v50
    %65 = vmatprep.subr.mxu0 0.0
    %66 = vmatpush1.msra.mxu0 %v49
    %67 = vmatprep.subr.mxu0 0.0
    %68 = vmatpush1.msra.mxu0 %v48
    %69 = vmatprep.subr.mxu0 0.0
    %70 = vmatpush1.msra.mxu0 %v47
    %71 = vmatprep.subr.mxu0 0.0
    %72 = vmatpush1.msra.mxu0 %v46
    %73 = vmatprep.subr.mxu0 0.0
    %74 = vmatpush1.msra.mxu0 %v45
    %75 = vmatprep.subr.mxu0 0.0
    %76 = vmatpush1.msra.mxu0 %v44
    %77 = vmatprep.subr.mxu0 0.0
    %78 = vmatpush1.msra.mxu0 %v43
    %79 = vmatprep.subr.mxu0 0.0
    %80 = vmatpush1.msra.mxu0 %v42
    %81 = vmatprep.subr.mxu0 0.0
    %82 = vmatpush1.msra.mxu0 %v41
    %83 = vmatprep.subr.mxu0 0.0
    %84 = vmatpush1.msra.mxu0 %v40
    %85 = vmatprep.subr.mxu0 0.0
    %86 = vmatpush1.msra.mxu0 %v39
    %87 = vmatprep.subr.mxu0 0.0
    %88 = vmatpush2.msra.mxu0 0.0
    %89 = vmatprep.subr.mxu0 0.0
    %90 = vmatpush2.msra.mxu0 0.0
    %91 = vmatprep.subr.mxu0 0.0
    %92 = vmatpush2.msra.mxu0 0.0
    %93 = vmatprep.subr.mxu0 0.0
    %94 = vmatpush2.msra.mxu0 0.0
    %95 = vmatprep.subr.mxu0 0.0
    %96 = vmatpush2.msra.mxu0 0.0
    %97 = vmatprep.subr.mxu0 0.0
    %98 = vmatpush2.msra.mxu0 0.0
    %99 = vmatprep.subr.mxu0 0.0
    %100 = vmatpush2.msra.mxu0 0.0
    %101 = vmatprep.subr.mxu0 0.0
    %102 = vmatpush2.msra.mxu0 0.0
    %103 = vmatprep.subr.mxu0 0.0
    %104 = vmatpush2.msra.mxu0 0.0
    %105 = vmatprep.subr.mxu0 0.0
    %106 = vmatpush2.msra.mxu0 0.0
    %107 = vmatprep.subr.mxu0 0.0
    %108 = vmatpush2.msra.mxu0 0.0
    %109 = vmatprep.subr.mxu0 0.0
    %110 = vmatpush2.msra.mxu0 0.0
    %111 = vmatprep.subr.mxu0 0.0
    %112 = vmatpush2.msra.mxu0 0.0
    %113 = vmatprep.subr.mxu0 0.0
    %114 = vmatpush2.msra.mxu0 0.0
    %115 = vmatprep.subr.mxu0 0.0
    %116 = vmatpush2.msra.mxu0 0.0
    %117 = vmatprep.subr.mxu0 0.0
    %118 = vmatpush2.msra.mxu0 0.0
    %119 = vmatprep.mubr.f32.mxu0 0.0
    %120 = vmatmul.mubr.f32.gmra.mxu0 %v38
    %v121 = vpop.f32.mrf.mxu0
    %v122 = vadd.f32 0.0, %v121
    %v123 = vpop.f32.mrf.mxu0
    %124 = vdwg.mxu0
    %125 = vst [vmem:[#allocation7] sm:$0x3] %v122
    // Predicated region
    $region18: #{tpu_custom_call.1} parent=1 // pred_check
      _
    $region19: #{tpu_custom_call.1} parent=1 // pred_check_branch
      %127 = sbr.rel (0) target = $region21
    $region20: #{tpu_custom_call.1} parent=1 // pred_region
      %s129 = ssub.s32 32, 32
      %130 = vsyncadd [#allocation4], %s129
      %s132 = sshll.u32 [#allocation7], 4
      %s133 = int_to_ptr.vmem [resolvable:$true] %s132
      %135 = dma.vmem_to_hbm [thread:$0]  %s133, 32, %s2, [#allocation4]
    $region21: #{tpu_custom_call.1} parent=1 // pred_fallthru
      _
    // Predicated region
    $region22: #{tpu_custom_call.1} parent=1 // pred_check
      _
    $region23: #{tpu_custom_call.1} parent=1 // pred_check_branch
      %137 = sbr.rel (0) target = $region25
    $region24: #{tpu_custom_call.1} parent=1 // pred_region
      %138 = dma.done [#allocation4], 32
    $region25: #{tpu_custom_call.1} parent=1 // pred_fallthru
      _
    %139 = vsyncpa [#allocation3], 1
    %140 = vsyncpa [#allocation6], 1
    %141 = vsyncpa [#allocation4], 1

</llo_original>
